<compile_context>
chip_gen: v5e
topology: v5e:2x2
jax: 0.10.0
libtpu: 0.0.40
codegen_flags: <defaults>
</compile_context>

<pallas_src>
import functools
import math

import jax
import jax.numpy as jnp
from jax.experimental import pallas as pl
from jax.experimental.pallas import tpu as pltpu


# --------------------------------------------------------------------------
# Kernels
# --------------------------------------------------------------------------
def _ln_kernel(x_ref, w_ref, b_ref, o_ref, *, eps: float, inv_h: float):
    """Standard path: one logical row per kernel row, H full-extent."""
    x = x_ref[...].astype(jnp.float32)                       # (tr, H)
    s1 = jnp.sum(x, axis=-1, keepdims=True)                  # (tr, 1)
    s2 = jnp.sum(x * x, axis=-1, keepdims=True)              # (tr, 1)
    mean = s1 * inv_h
    var = jnp.maximum(s2 * inv_h - mean * mean, 0.0)         # clamp: cancellation guard
    inv_std = jax.lax.rsqrt(var + eps)
    gamma = w_ref[...].astype(jnp.float32)                   # (1, H)
    beta = b_ref[...].astype(jnp.float32)                    # (1, H)
    o_ref[...] = (((x - mean) * inv_std) * gamma + beta).astype(o_ref.dtype)


def _ln_packed_kernel(x_ref, w_ref, b_ref, bd_ref, o_ref, *, eps: float, inv_h: float):
    """Small-H path: g = 128//H logical rows packed per 128-lane kernel row.

    Segmented sums (and their per-segment broadcast back over the lanes) are
    computed with one matmul against a constant (Hp, Hp) block-diagonal ones
    matrix on the idle MXU, so all loads/stores stay lane-dense.
    """
    x = x_ref[...].astype(jnp.float32)                       # (tr, Hp)
    bd = bd_ref[...]                                         # (Hp, Hp) block-diag ones
    s1 = jnp.dot(x, bd, preferred_element_type=jnp.float32)      # seg-sum, broadcast
    s2 = jnp.dot(x * x, bd, preferred_element_type=jnp.float32)  # seg-sum of squares
    mean = s1 * inv_h
    var = jnp.maximum(s2 * inv_h - mean * mean, 0.0)
    inv_std = jax.lax.rsqrt(var + eps)
    gamma = w_ref[...].astype(jnp.float32)                   # (1, Hp) = tiled gamma
    beta = b_ref[...].astype(jnp.float32)                    # (1, Hp) = tiled beta
    o_ref[...] = (((x - mean) * inv_std) * gamma + beta).astype(o_ref.dtype)


# --------------------------------------------------------------------------
# Tiling / chip parameters
# --------------------------------------------------------------------------
def _chip_params():
    """(target_block_bytes, vmem_limit_bytes, num_tensorcores) per generation."""
    target = 6 * 1024 * 1024          # v5e/v6e: 128 MiB VMEM -> large blocks
    vmem_limit = 64 * 1024 * 1024
    num_cores = 1
    try:
        kind = jax.devices()[0].device_kind.lower()
    except Exception:
        kind = ""
    if "v7" in kind:
        # v7x: 64 MiB physical VMEM per TensorCore, 2 TensorCores per chip.
        target = 3 * 1024 * 1024
        vmem_limit = 40 * 1024 * 1024
        num_cores = 2
    return target, vmem_limit, num_cores


def _choose_tile_rows(rows: int, H: int, itemsize: int,
                      target_block_bytes: int, num_cores: int) -> int:
    # Sublane multiple for the packed vreg layout: 8 (f32), 16 (bf16), 32 (int8).
    sub = max(8, 32 // itemsize)
    tr = target_block_bytes // max(H * itemsize, 1)
    tr = max(sub, (tr // sub) * sub)
    if num_cores > 1:
        # Keep >= 2 grid steps per TensorCore so "parallel" sharding balances.
        cap = (rows // (2 * num_cores) // sub) * sub
        if cap >= sub:
            tr = min(tr, cap)
    if rows <= tr:
        # Single full-extent block: always legal, even when rows % sub != 0.
        return rows
    return tr


# --------------------------------------------------------------------------
# pallas_call plumbing shared by both paths
# --------------------------------------------------------------------------
def _run_pallas(kernel, x2, extra_args, extra_specs, rows_k, H_k, tr, vmem_limit):
    grid = (pl.cdiv(rows_k, tr),)
    itemsize = jnp.dtype(x2.dtype).itemsize
    cost = pl.CostEstimate(
        flops=12 * rows_k * H_k,
        transcendentals=rows_k,
        bytes_accessed=2 * rows_k * H_k * itemsize + 2 * H_k * itemsize,
    )
    return pl.pallas_call(
        kernel,
        out_shape=jax.ShapeDtypeStruct((rows_k, H_k), x2.dtype),
        grid_spec=pltpu.PrefetchScalarGridSpec(
            num_scalar_prefetch=0,
            grid=grid,
            in_specs=[pl.BlockSpec((tr, H_k), lambda i: (i, 0))] + list(extra_specs),
            out_specs=pl.BlockSpec((tr, H_k), lambda i: (i, 0)),
        ),
        compiler_params=pltpu.CompilerParams(
            dimension_semantics=("parallel",),
            vmem_limit_bytes=vmem_limit,
        ),
        cost_estimate=cost,
    )(x2, *extra_args)


# --------------------------------------------------------------------------
# Public wrapper (matches LayerNorm.forward with elementwise_affine=True)
# --------------------------------------------------------------------------
def layer_norm(x: jax.Array, weight: jax.Array, bias: jax.Array,
               eps: float = 1e-5) -> jax.Array:
    """LayerNorm over the trailing dims given by weight.shape (== normalized_shape).

    For elementwise_affine=False simply pass ones/zeros of normalized_shape.
    """
    orig_shape = x.shape
    H = int(math.prod(weight.shape)) if weight.ndim > 0 else 1
    total = int(math.prod(orig_shape))
    rows = total // H
    dtype = x.dtype
    itemsize = jnp.dtype(dtype).itemsize

    target_block_bytes, vmem_limit, num_cores = _chip_params()

    x2 = x.reshape(rows, H)
    w2 = weight.reshape(1, H)
    b2 = bias.reshape(1, H)

    # Guard: if even an 8-row block (double-buffered in+out plus the in-kernel
    # f32 temporaries) would not fit the VMEM budget, fall back to plain XLA.
    sub = max(8, 32 // itemsize)
    min_footprint = 4 * sub * H * itemsize + 3 * sub * H * 4
    if min_footprint > vmem_limit:
        # TODO(synk): tile H with a two-pass (stats + normalize) Pallas kernel
        # for pathologically large hidden sizes instead of falling back to XLA.
        xf = x2.astype(jnp.float32)
        mean = jnp.mean(xf, axis=-1, keepdims=True)
        var = jnp.mean((xf - mean) ** 2, axis=-1, keepdims=True)
        y = (xf - mean) * jax.lax.rsqrt(var + eps)
        y = y * w2.astype(jnp.float32) + b2.astype(jnp.float32)
        return y.astype(dtype).reshape(orig_shape)

    g = 128 // H if (0 < H < 128 and 128 % H == 0) else 1
    if g > 1 and rows % g == 0:
        # ---- lane-packed small-H path ----
        Hp = g * H                                 # = 128
        rows_p = rows // g
        xp = x2.reshape(rows_p, Hp)                # contiguous view: g rows per packed row
        wp = jnp.tile(w2, (1, g))
        bp = jnp.tile(b2, (1, g))
        # (Hp, Hp) block-diagonal matrix of ones: one (H, H) all-ones block per segment.
        bd = jnp.kron(jnp.eye(g, dtype=jnp.float32), jnp.ones((H, H), jnp.float32))

        tr = _choose_tile_rows(rows_p, Hp, itemsize, target_block_bytes, num_cores)
        extra_specs = [
            pl.BlockSpec((1, Hp), lambda i: (0, 0)),    # gamma (resident)
            pl.BlockSpec((1, Hp), lambda i: (0, 0)),    # beta  (resident)
            pl.BlockSpec((Hp, Hp), lambda i: (0, 0)),   # block-diag ones (resident)
        ]
        out = _run_pallas(
            functools.partial(_ln_packed_kernel, eps=eps, inv_h=1.0 / H),
            xp, (wp, bp, bd), extra_specs, rows_p, Hp, tr, vmem_limit)
        return out.reshape(orig_shape)

    # ---- standard path ----
    tr = _choose_tile_rows(rows, H, itemsize, target_block_bytes, num_cores)
    extra_specs = [
        pl.BlockSpec((1, H), lambda i: (0, 0)),         # gamma (resident)
        pl.BlockSpec((1, H), lambda i: (0, 0)),         # beta  (resident)
    ]
    out = _run_pallas(
        functools.partial(_ln_kernel, eps=eps, inv_h=1.0 / H),
        x2, (w2, b2), extra_specs, rows, H, tr, vmem_limit)
    return out.reshape(orig_shape)


# --------------------------------------------------------------------------
# Reference + self-test
# --------------------------------------------------------------------------
def _layer_norm_ref(x, weight, bias, eps):
    ndims = weight.ndim if weight.ndim > 0 else 1
    axes = tuple(range(x.ndim - ndims, x.ndim))
    xf = x.astype(jnp.float32)
    mean = jnp.mean(xf, axis=axes, keepdims=True)
    var = jnp.mean((xf - mean) ** 2, axis=axes, keepdims=True)
    y = weight.astype(jnp.float32) * ((xf - mean) / jnp.sqrt(var + eps)) + bias.astype(jnp.float32)
    return y.astype(x.dtype)


if __name__ == "__main__":
    # Module config: LayerNorm(normalized_shape=hidden, eps=1e-5, elementwise_affine=True)
    batch, seq, hidden = 2, 8, 32
    eps = 1e-5

    key = jax.random.PRNGKey(0)
    x = jax.random.normal(key, (batch, seq, hidden), dtype=jnp.float32)
    weight = jnp.ones((hidden,), dtype=jnp.float32)   # nn.Parameter default
    bias = jnp.zeros((hidden,), dtype=jnp.float32)    # nn.Parameter default

    out = jax.block_until_ready(layer_norm(x, weight, bias, eps=eps))
    ref = _layer_norm_ref(x, weight, bias, eps)
    assert out.shape == x.shape
    assert jnp.max(jnp.abs(out - ref)) < 1e-4

    # Standard path (H == 128), row count not a multiple of 8.
    x2 = jax.random.normal(jax.random.PRNGKey(1), (3, 5, 128), dtype=jnp.float32)
    w2 = jnp.linspace(0.5, 1.5, 128, dtype=jnp.float32)
    b2 = jnp.linspace(-0.1, 0.1, 128, dtype=jnp.float32)
    out2 = jax.block_until_ready(layer_norm(x2, w2, b2, eps=eps))
    ref2 = _layer_norm_ref(x2, w2, b2, eps)
    assert jnp.max(jnp.abs(out2 - ref2)) < 1e-4

    # Small H but rows % g != 0 -> falls back to the standard kernel.
    x3 = jax.random.normal(jax.random.PRNGKey(2), (3, 3, 64), dtype=jnp.float32)
    w3 = jnp.ones((64,), dtype=jnp.float32)
    b3 = jnp.zeros((64,), dtype=jnp.float32)
    out3 = jax.block_until_ready(layer_norm(x3, w3, b3, eps=eps))
    ref3 = _layer_norm_ref(x3, w3, b3, eps)
    assert jnp.max(jnp.abs(out3 - ref3)) < 1e-4

    # bf16 input, packed small-H path (checks itemsize-aware tiling + casts).
    x4 = jax.random.normal(jax.random.PRNGKey(3), (4, 8, 32), dtype=jnp.bfloat16)
    w4 = jnp.ones((32,), dtype=jnp.bfloat16)
    b4 = jnp.zeros((32,), dtype=jnp.bfloat16)
    out4 = jax.block_until_ready(layer_norm(x4, w4, b4, eps=eps))
    ref4 = _layer_norm_ref(x4, w4, b4, eps)
    assert jnp.max(jnp.abs(out4.astype(jnp.float32) - ref4.astype(jnp.float32))) < 3e-2

    print("KERNEL_OK")
</pallas_src>

<mosaic_0001>
module attributes {stable_mosaic.version = 11 : i64} {
  func.func @_ln_packed_kernel(%arg0: i32, %arg1: memref<4x128xf32, #tpu.memory_space<vmem>>, %arg2: memref<1x128xf32, #tpu.memory_space<vmem>>, %arg3: memref<1x128xf32, #tpu.memory_space<vmem>>, %arg4: memref<128x128xf32, #tpu.memory_space<vmem>>, %arg5: memref<4x128xf32, #tpu.memory_space<vmem>>) attributes {dimension_semantics = [#tpu.dimension_semantics<parallel>], iteration_bounds = array<i64: 1>, scalar_prefetch = 0 : i64, scratch_operands = 0 : i64, tpu.core_type = #tpu.core_type<tc>, window_params = [{transform_indices = @transform_0, window_bounds = array<i64: 4, 128>}, {pipeline_mode = #tpu.pipeline_mode<synchronous>, transform_indices = @transform_1, window_bounds = array<i64: 1, 128>}, {pipeline_mode = #tpu.pipeline_mode<synchronous>, transform_indices = @transform_2, window_bounds = array<i64: 1, 128>}, {pipeline_mode = #tpu.pipeline_mode<synchronous>, transform_indices = @transform_3, window_bounds = array<i64: 128, 128>}, {transform_indices = @transform_4, window_bounds = array<i64: 4, 128>}]} {
    %c0 = arith.constant 0 : index
    %c0_0 = arith.constant 0 : index
    %0 = vector.load %arg1[%c0, %c0_0] : memref<4x128xf32, #tpu.memory_space<vmem>>, vector<4x128xf32>
    %c0_1 = arith.constant 0 : index
    %c0_2 = arith.constant 0 : index
    %1 = vector.load %arg4[%c0_1, %c0_2] : memref<128x128xf32, #tpu.memory_space<vmem>>, vector<128x128xf32>
    %cst = arith.constant dense<0.000000e+00> : vector<4x128xf32>
    %2 = tpu.matmul %0, %1, %cst {dimension_numbers = #tpu.dot_dimension_numbers<[1], [0], [0], [1], [0, 0, 1, 1], [], []>} : vector<4x128xf32>, vector<128x128xf32>, vector<4x128xf32> -> vector<4x128xf32>
    %3 = arith.mulf %0, %0 : vector<4x128xf32>
    %cst_3 = arith.constant dense<0.000000e+00> : vector<4x128xf32>
    %4 = tpu.matmul %3, %1, %cst_3 {dimension_numbers = #tpu.dot_dimension_numbers<[1], [0], [0], [1], [0, 0, 1, 1], [], []>} : vector<4x128xf32>, vector<128x128xf32>, vector<4x128xf32> -> vector<4x128xf32>
    %cst_4 = arith.constant 3.125000e-02 : f32
    %5 = vector.broadcast %cst_4 : f32 to vector<4x128xf32>
    %6 = arith.mulf %2, %5 : vector<4x128xf32>
    %cst_5 = arith.constant 3.125000e-02 : f32
    %7 = vector.broadcast %cst_5 : f32 to vector<4x128xf32>
    %8 = arith.mulf %4, %7 : vector<4x128xf32>
    %9 = arith.mulf %6, %6 : vector<4x128xf32>
    %10 = arith.subf %8, %9 : vector<4x128xf32>
    %cst_6 = arith.constant 0.000000e+00 : f32
    %11 = vector.broadcast %cst_6 : f32 to vector<4x128xf32>
    %12 = arith.maximumf %10, %11 : vector<4x128xf32>
    %cst_7 = arith.constant 9.99999974E-6 : f32
    %13 = vector.broadcast %cst_7 : f32 to vector<4x128xf32>
    %14 = arith.addf %12, %13 : vector<4x128xf32>
    %15 = math.rsqrt %14 : vector<4x128xf32>
    %c0_8 = arith.constant 0 : index
    %c0_9 = arith.constant 0 : index
    %16 = vector.load %arg2[%c0_8, %c0_9] : memref<1x128xf32, #tpu.memory_space<vmem>>, vector<1x128xf32>
    %c0_10 = arith.constant 0 : index
    %c0_11 = arith.constant 0 : index
    %17 = vector.load %arg3[%c0_10, %c0_11] : memref<1x128xf32, #tpu.memory_space<vmem>>, vector<1x128xf32>
    %18 = arith.subf %0, %6 : vector<4x128xf32>
    %19 = arith.mulf %18, %15 : vector<4x128xf32>
    %20 = vector.broadcast %16 : vector<1x128xf32> to vector<4x128xf32>
    %21 = arith.mulf %19, %20 : vector<4x128xf32>
    %22 = vector.broadcast %17 : vector<1x128xf32> to vector<4x128xf32>
    %23 = arith.addf %21, %22 : vector<4x128xf32>
    %c0_12 = arith.constant 0 : index
    %c0_13 = arith.constant 0 : index
    %24 = vector.load %arg5[%c0_12, %c0_13] : memref<4x128xf32, #tpu.memory_space<vmem>>, vector<4x128xf32>
    tpu.vector_store %arg5[%c0_12, %c0_13], %23 {strides = array<i32>} : memref<4x128xf32, #tpu.memory_space<vmem>>, vector<4x128xf32>,
    return
  }
  func.func @transform_0(%arg0: i32) -> (i32, i32) {
    %c0_i32 = arith.constant 0 : i32
    %c0_i32_0 = arith.constant 0 : i32
    return %arg0, %c0_i32 : i32, i32
  }
  func.func @transform_1(%arg0: i32) -> (i32, i32) {
    %c0_i32 = arith.constant 0 : i32
    %c0_i32_0 = arith.constant 0 : i32
    %c0_i32_1 = arith.constant 0 : i32
    return %c0_i32, %c0_i32_0 : i32, i32
  }
  func.func @transform_2(%arg0: i32) -> (i32, i32) {
    %c0_i32 = arith.constant 0 : i32
    %c0_i32_0 = arith.constant 0 : i32
    %c0_i32_1 = arith.constant 0 : i32
    return %c0_i32, %c0_i32_0 : i32, i32
  }
  func.func @transform_3(%arg0: i32) -> (i32, i32) {
    %c0_i32 = arith.constant 0 : i32
    %c0_i32_0 = arith.constant 0 : i32
    %c0_i32_1 = arith.constant 0 : i32
    return %c0_i32, %c0_i32_0 : i32, i32
  }
  func.func @transform_4(%arg0: i32) -> (i32, i32) {
    %c0_i32 = arith.constant 0 : i32
    %c0_i32_0 = arith.constant 0 : i32
    return %arg0, %c0_i32 : i32, i32
  }
}

</mosaic_0001>

<llo_original>
// kernel: tpu_custom_call.1
$region0: #{tpu_custom_call.1}
  #allocation0 [shape = 'u32[]', space=smem, size = 0x4, offset = 0x4, fixed_abs, tag = 'smem constant byte address 0x4 - core index']
  #allocation1 [shape = 'u32[72,128]{1,0:T(1,128)}', space=vmem, size = 0x9000, scoped, tag = 'internal scratch']
  %s0 = inlined_call_operand.hbm [shape: f32[4,128], index: 0, kind: input, shape index: {}]
  %s1 = inlined_call_operand.hbm [shape: f32[1,128], index: 1, kind: input, shape index: {}]
  %s2 = inlined_call_operand.vmem [shape: f32[1,128], index: 2, kind: input, shape index: {}]
  %s3 = inlined_call_operand.hbm [shape: f32[128,128], index: 3, kind: input, shape index: {}]
  %s4 = inlined_call_operand.hbm [shape: f32[4,128], index: 4, kind: output, shape index: {}]
  %s5 = sld [smem:[#allocation0]]
  $region38: #{tpu_custom_call.1} parent=0
    _
  %s7 = ssub.s32 1, %s5
  %s8 = scalar_select 0, %s7, %s5
  $region1: #{tpu_custom_call.1} parent=0
    #allocation2 [shape = 'u8[2048]{0}', space=vmem, size = 0x800, scoped, tag = 'input window, operand 0, single buffered']
    #allocation3 [shape = 's32[1]{0}', space=sflag, size = 0x4, scoped, tag = 'scoped memory for tpu_custom_call.1']
    #allocation4 [shape = 's32[1]{0}', space=sflag, size = 0x4, scoped, tag = 'scoped memory for tpu_custom_call.1']
    #allocation5 [shape = 'u8[512]{0}', space=vmem, size = 0x400, scoped, tag = 'input window, operand 1, single buffered']
    #allocation6 [shape = 's32[1]{0}', space=sflag, size = 0x4, scoped, tag = 'scoped memory for tpu_custom_call.1']
    #allocation7 [shape = 'u8[65536]{0}', space=vmem, size = 0x10000, scoped, tag = 'input window, operand 3, single buffered']
    #allocation8 [shape = 'u8[2048]{0}', space=vmem, size = 0x800, scoped, tag = 'output window, operand 0, single buffered']
    %9 = vsyncpa [#allocation3], 0
    %10 = vsyncpa [#allocation6], 0
    %11 = vsyncpa [#allocation4], 0
    // Predicated region
    $region2: #{tpu_custom_call.1} parent=1 // pred_check
      _
    $region3: #{tpu_custom_call.1} parent=1 // pred_check_branch
      %13 = sbr.rel (0) target = $region5
    $region4: #{tpu_custom_call.1} parent=1 // pred_region
      %15 = vsyncadd [#allocation3], 0
      %s17 = sshll.u32 %s0, 4
      %s18 = int_to_ptr.hbm [resolvable:$true] %s17
      %s19 = sshll.u32 [#allocation2], 4
      %s20 = int_to_ptr.vmem [resolvable:$true] %s19
      %22 = dma.hbm_to_vmem [thread:$0]  %s18, 64, %s20, [#allocation3]
    $region5: #{tpu_custom_call.1} parent=1 // pred_fallthru
      _
    // Predicated region
    $region6: #{tpu_custom_call.1} parent=1 // pred_check
      _
    $region7: #{tpu_custom_call.1} parent=1 // pred_check_branch
      %24 = sbr.rel (0) target = $region9
    $region8: #{tpu_custom_call.1} parent=1 // pred_region
      %26 = vsyncadd [#allocation6], 0
      %s28 = sshll.u32 %s1, 4
      %s29 = int_to_ptr.hbm [resolvable:$true] %s28
      %s30 = sshll.u32 [#allocation5], 4
      %s31 = int_to_ptr.vmem [resolvable:$true] %s30
      %33 = dma.hbm_to_vmem [thread:$0]  %s29, 16, %s31, [#allocation6]
    $region9: #{tpu_custom_call.1} parent=1 // pred_fallthru
      _
    // Predicated region
    $region10: #{tpu_custom_call.1} parent=1 // pred_check
      _
    $region11: #{tpu_custom_call.1} parent=1 // pred_check_branch
      %35 = sbr.rel (0) target = $region13
    $region12: #{tpu_custom_call.1} parent=1 // pred_region
      _
    $region13: #{tpu_custom_call.1} parent=1 // pred_fallthru
      _
    // Predicated region
    $region14: #{tpu_custom_call.1} parent=1 // pred_check
      _
    $region15: #{tpu_custom_call.1} parent=1 // pred_check_branch
      %37 = sbr.rel (0) target = $region17
    $region16: #{tpu_custom_call.1} parent=1 // pred_region
      %39 = vsyncadd [#allocation6], 0
      %s40 = sshll.u32 %s3, 4
      %s41 = int_to_ptr.hbm [resolvable:$true] %s40
      %s42 = sshll.u32 [#allocation7], 4
      %s43 = int_to_ptr.vmem [resolvable:$true] %s42
      %48 = dma.hbm_to_vmem [thread:$0]  %s41, 2048, %s43, [#allocation6], 128, 128, 8
    $region17: #{tpu_custom_call.1} parent=1 // pred_fallthru
      _
    // Predicated region
    $region18: #{tpu_custom_call.1} parent=1 // pred_check
      _
    $region19: #{tpu_custom_call.1} parent=1 // pred_check_branch
      %50 = sbr.rel (0) target = $region21
    $region20: #{tpu_custom_call.1} parent=1 // pred_region
      %52 = dma.done [#allocation3], 64
    $region21: #{tpu_custom_call.1} parent=1 // pred_fallthru
      _
    // Predicated region
    $region22: #{tpu_custom_call.1} parent=1 // pred_check
      _
    $region23: #{tpu_custom_call.1} parent=1 // pred_check_branch
      %54 = sbr.rel (0) target = $region25
    $region24: #{tpu_custom_call.1} parent=1 // pred_region
      %56 = dma.done [#allocation6], 16
    $region25: #{tpu_custom_call.1} parent=1 // pred_fallthru
      _
    // Predicated region
    $region26: #{tpu_custom_call.1} parent=1 // pred_check
      _
    $region27: #{tpu_custom_call.1} parent=1 // pred_check_branch
      %58 = sbr.rel (0) target = $region29
    $region28: #{tpu_custom_call.1} parent=1 // pred_region
      %60 = dma.done [#allocation6], 2048
    $region29: #{tpu_custom_call.1} parent=1 // pred_fallthru
      _
    %v61 = vld [vmem:[#allocation2] sm:$0xf]
    %v62 = vld [vmem:[#allocation7] sm:$0xff]
    %v63 = vld [vmem:[#allocation7 + $0x8] sm:$0xff]
    %v64 = vld [vmem:[#allocation7 + $0x10] sm:$0xff]
    %v65 = vld [vmem:[#allocation7 + $0x18] sm:$0xff]
    %v66 = vld [vmem:[#allocation7 + $0x20] sm:$0xff]
    %v67 = vld [vmem:[#allocation7 + $0x28] sm:$0xff]
    %v68 = vld [vmem:[#allocation7 + $0x30] sm:$0xff]
    %v69 = vld [vmem:[#allocation7 + $0x38] sm:$0xff]
    %v70 = vld [vmem:[#allocation7 + $0x40] sm:$0xff]
    %v71 = vld [vmem:[#allocation7 + $0x48] sm:$0xff]
    %v72 = vld [vmem:[#allocation7 + $0x50] sm:$0xff]
    %v73 = vld [vmem:[#allocation7 + $0x58] sm:$0xff]
    %v74 = vld [vmem:[#allocation7 + $0x60] sm:$0xff]
    %v75 = vld [vmem:[#allocation7 + $0x68] sm:$0xff]
    %v76 = vld [vmem:[#allocation7 + $0x70] sm:$0xff]
    %v77 = vld [vmem:[#allocation7 + $0x78] sm:$0xff]
    %78 = vmatpush.msra.mxu0 %v77
    %79 = vmatpush.msra.mxu0 %v76
    %80 = vmatpush.msra.mxu0 %v75
    %81 = vmatpush.msra.mxu0 %v74
    %82 = vmatpush.msra.mxu0 %v73
    %83 = vmatpush.msra.mxu0 %v72
    %84 = vmatpush.msra.mxu0 %v71
    %85 = vmatpush.msra.mxu0 %v70
    %86 = vmatpush.msra.mxu0 %v69
    %87 = vmatpush.msra.mxu0 %v68
    %88 = vmatpush.msra.mxu0 %v67
    %89 = vmatpush.msra.mxu0 %v66
    %90 = vmatpush.msra.mxu0 %v65
    %91 = vmatpush.msra.mxu0 %v64
    %92 = vmatpush.msra.mxu0 %v63
    %93 = vmatpush.msra.mxu0 %v62
    %94 = vmatmul.f32.gmra.mxu0 %v61
    %v95 = vpop.f32.mrf.mxu0
    %v96 = vadd.f32 0.0, %v95
    %97 = vdwg.mxu0
    %v98 = vmul.f32 %v61, %v61
    %99 = vmatpush.msra.mxu0 %v77
    %100 = vmatpush.msra.mxu0 %v76
    %101 = vmatpush.msra.mxu0 %v75
    %102 = vmatpush.msra.mxu0 %v74
    %103 = vmatpush.msra.mxu0 %v73
    %104 = vmatpush.msra.mxu0 %v72
    %105 = vmatpush.msra.mxu0 %v71
    %106 = vmatpush.msra.mxu0 %v70
    %107 = vmatpush.msra.mxu0 %v69
    %108 = vmatpush.msra.mxu0 %v68
    %109 = vmatpush.msra.mxu0 %v67
    %110 = vmatpush.msra.mxu0 %v66
    %111 = vmatpush.msra.mxu0 %v65
    %112 = vmatpush.msra.mxu0 %v64
    %113 = vmatpush.msra.mxu0 %v63
    %114 = vmatpush.msra.mxu0 %v62
    %115 = vmatmul.f32.gmra.mxu0 %v98
    %v116 = vpop.f32.mrf.mxu0
    %v117 = vadd.f32 0.0, %v116
    %118 = vdwg.mxu0
    %v119 = vmul.f32 %v96, 0.03125
    %v120 = vmul.f32 %v117, 0.03125
    %v121 = vmul.f32 %v119, %v119
    %v122 = vsub.f32 %v120, %v121
    %v123 = vmax.f32 %v122, 0.0
    %v124 = vadd.f32 %v123, 1e-05
    %v125 = vrsqrt.pop %v124
    %v126 = vmul.f32 %v125, %v124
    %v127 = vmul.f32 %v126, %v125
    %v128 = vmul.f32 0.5, %v127
    %v129 = vsub.f32 1.5, %v128
    %v130 = vmul.f32 %v125, %v129
    %vm131 = vweird.f32 %v124
    %vm132 = vweird.f32 %v125
    %vm133 = vmor %vm131, %vm132
    %v134 = vsel %vm133, %v125, %v130
    %v135 = vld [vmem:[#allocation5] sm:$0x1]
    %v136 = vld [vmem:[%s2] sm:$0x1]
    %v137 = vsub.f32 %v61, %v119
    %v138 = vmul.f32 %v137, %v134
    %v140 = vperm.slane %v135, 0
    %v142 = vmul.f32 %v138, %v140
    %v144 = vperm.slane %v136, 0
    %v146 = vadd.f32 %v142, %v144
    %147 = vst [vmem:[#allocation8] sm:$0xf] %v146
    // Predicated region
    $region30: #{tpu_custom_call.1} parent=1 // pred_check
      _
    $region31: #{tpu_custom_call.1} parent=1 // pred_check_branch
      %149 = sbr.rel (0) target = $region33
    $region32: #{tpu_custom_call.1} parent=1 // pred_region
      %151 = vsyncadd [#allocation4], 0
      %s153 = sshll.u32 [#allocation8], 4
      %s154 = int_to_ptr.vmem [resolvable:$true] %s153
      %s155 = sshll.u32 %s4, 4
      %s156 = int_to_ptr.hbm [resolvable:$true] %s155
      %158 = dma.vmem_to_hbm [thread:$0]  %s154, 64, %s156, [#allocation4]
    $region33: #{tpu_custom_call.1} parent=1 // pred_fallthru
      _
    // Predicated region
    $region34: #{tpu_custom_call.1} parent=1 // pred_check
      _
    $region35: #{tpu_custom_call.1} parent=1 // pred_check_branch
      %160 = sbr.rel (0) target = $region37
    $region36: #{tpu_custom_call.1} parent=1 // pred_region
      %162 = dma.done [#allocation4], 64
    $region37: #{tpu_custom_call.1} parent=1 // pred_fallthru
      _
    %163 = vsyncpa [#allocation3], 1
    %164 = vsyncpa [#allocation6], 1
    %165 = vsyncpa [#allocation4], 1

</llo_original>
